<compile_context>
chip_gen: v6e
topology: v6e:2x2x1
jax: 0.10.0
libtpu: 0.0.40
codegen_flags: <defaults>
</compile_context>

<pallas_src>
import math

import jax
import jax.numpy as jnp
from jax.experimental import pallas as pl
from jax.experimental.pallas import tpu as pltpu

# ---------------- config (small synthetic sizes) ----------------
HIDDEN = 32           # config.hidden_dim
N_HEADS = 4           # config.n_heads
HEAD_DIM = HIDDEN // N_HEADS
B = 2
L = 8                 # query sequence length
S = 8                 # key/value sequence length
EPS = 1e-5            # nn.LayerNorm default eps

# packed-parameter slab row layout (all offsets are multiples of 8 -> free
# sublane-aligned static slices inside the kernel)
_VEC_ROWS = 8                       # rows 0..7: ln_g, ln_b, bq*, bk, bv, bo, pad
_WQ0 = _VEC_ROWS                    # rows  8..39 : Wq^T (pre-scaled)
_WK0 = _WQ0 + HIDDEN                # rows 40..71 : Wk^T
_WV0 = _WK0 + HIDDEN                # rows 72..103: Wv^T
_WO0 = _WV0 + HIDDEN                # rows 104..135: Wo^T
_SLAB_ROWS = _WO0 + HIDDEN          # 136


def _layernorm(x, gamma, beta):
    mean = jnp.mean(x, axis=-1, keepdims=True)
    var = jnp.mean((x - mean) ** 2, axis=-1, keepdims=True)
    return (x - mean) * jax.lax.rsqrt(var + EPS) * gamma + beta


# ---------------- fused kernel ----------------
def attn_block_kernel(q_ref, k_ref, v_ref, bias_ref, p_ref, out_ref):
    """LayerNorm(q) -> multi-head attention -> out projection, one invocation.

    q_ref    : (B*L, E)   flattened queries
    k_ref    : (B*S, E)   flattened keys
    v_ref    : (B*S, E)   flattened values
    bias_ref : (B*L, B*S) additive bias (0 valid / -1e9 cross-batch or padded)
    p_ref    : (_SLAB_ROWS, E) packed parameters (see layout above)
    out_ref  : (B*L, E)
    """
    q = q_ref[...]
    k = k_ref[...]
    v = v_ref[...]
    bias = bias_ref[...]

    # -- packed params: sublane-aligned static slices, single DMA upstream --
    ln_g = p_ref[0:1, :]
    ln_b = p_ref[1:2, :]
    bq = p_ref[2:3, :]          # pre-scaled by 1/sqrt(head_dim)
    bk = p_ref[3:4, :]
    bv = p_ref[4:5, :]
    bo = p_ref[5:6, :]
    wq = p_ref[_WQ0:_WQ0 + HIDDEN, :]   # pre-scaled by 1/sqrt(head_dim)
    wk = p_ref[_WK0:_WK0 + HIDDEN, :]
    wv = p_ref[_WV0:_WV0 + HIDDEN, :]
    wo = p_ref[_WO0:_WO0 + HIDDEN, :]

    # -- LayerNorm(query) --
    qn = _layernorm(q, ln_g, ln_b)

    # -- input projections: three (16,32)@(32,32) MXU matmuls --
    qp = jnp.dot(qn, wq, preferred_element_type=jnp.float32) + bq
    kp = jnp.dot(k, wk, preferred_element_type=jnp.float32) + bk
    vp = jnp.dot(v, wv, preferred_element_type=jnp.float32) + bv

    # -- per-head attention (unrolled; softmax scale already folded into Wq) --
    head_outs = []
    for h in range(N_HEADS):
        lo = h * HEAD_DIM
        hi = lo + HEAD_DIM
        qh = qp[:, lo:hi]
        kh = kp[:, lo:hi]
        vh = vp[:, lo:hi]
        scores = jax.lax.dot_general(
            qh, kh, (((1,), (1,)), ((), ())),
            preferred_element_type=jnp.float32) + bias            # (BL, BS)
        scores = scores - jnp.max(scores, axis=-1, keepdims=True)
        e = jnp.exp(scores)
        inv = pl.reciprocal(jnp.sum(e, axis=-1, keepdims=True), approx=True)
        p = e * inv
        head_outs.append(jnp.dot(p, vh, preferred_element_type=jnp.float32))

    # -- concat heads, ONE out-projection matmul (16,32)@(32,32) --
    merged = jnp.concatenate(head_outs, axis=1)                    # (BL, E)
    out = jnp.dot(merged, wo, preferred_element_type=jnp.float32) + bo
    out_ref[...] = out.astype(out_ref.dtype)                       # dropout = id


# ---------------- wrapper ----------------
def pack_attn_params(p):
    """Pack all AttnBlock parameters into one (136, E) f32 slab.

    Also folds the 1/sqrt(head_dim) softmax scale into Wq^T and bq (one-time
    host transform).
    """
    scale = 1.0 / math.sqrt(HEAD_DIM)
    vec = jnp.zeros((_VEC_ROWS, HIDDEN), jnp.float32)
    vec = vec.at[0].set(p["ln_g"])
    vec = vec.at[1].set(p["ln_b"])
    vec = vec.at[2].set(p["bq"] * scale)
    vec = vec.at[3].set(p["bk"])
    vec = vec.at[4].set(p["bv"])
    vec = vec.at[5].set(p["bo"])
    slab = jnp.concatenate(
        [vec, p["wqT"] * scale, p["wkT"], p["wvT"], p["woT"]], axis=0)
    assert slab.shape == (_SLAB_ROWS, HIDDEN)
    return slab


def attn_block(query, key, value, key_padding_mask, slab, attn_mask=None):
    """AttnBlock.forward: dropout(MHA(LayerNorm(query), key, value, mask))."""
    Bq, Lq, E = query.shape
    Bk, Sk, _ = key.shape

    # Flatten (batch, seq) -> rows; batch isolation is done via the bias.
    q2 = query.reshape(Bq * Lq, E)
    k2 = key.reshape(Bk * Sk, E)
    v2 = value.reshape(Bk * Sk, E)

    # Additive attention bias: 0 where (same batch & key not padded), else -1e9.
    qb = jnp.repeat(jnp.arange(Bq), Lq)                 # (B*L,)
    kb = jnp.repeat(jnp.arange(Bk), Sk)                 # (B*S,)
    valid = (qb[:, None] == kb[None, :]) & (~key_padding_mask.reshape(-1))[None, :]
    bias = jnp.where(valid, 0.0, -1e9).astype(jnp.float32)
    if attn_mask is not None:
        if attn_mask.dtype == jnp.bool_:
            am = jnp.where(attn_mask, -1e9, 0.0).astype(jnp.float32)
        else:
            am = attn_mask.astype(jnp.float32)
        bias = bias + jnp.tile(am, (Bq, Bk))

    vmem = pl.BlockSpec(memory_space=pltpu.MemorySpace.VMEM)
    out = pl.pallas_call(
        attn_block_kernel,
        out_shape=jax.ShapeDtypeStruct((Bq * Lq, E), query.dtype),
        in_specs=[vmem, vmem, vmem, vmem, vmem],
        out_specs=vmem,
    )(q2, k2, v2, bias, slab)
    return out.reshape(Bq, Lq, E)


# ---------------- deterministic parameter init ----------------
def init_params(rng):
    ks = jax.random.split(rng, 4)

    def linear(k, fan_in, fan_out):
        kw, kb = jax.random.split(k)
        bound = 1.0 / math.sqrt(fan_in)
        w = jax.random.uniform(kw, (fan_out, fan_in), jnp.float32, -bound, bound)
        b = jax.random.uniform(kb, (fan_out,), jnp.float32, -bound, bound)
        return w.T, b                                    # store W^T

    wqT, bq = linear(ks[0], HIDDEN, HIDDEN)
    wkT, bk = linear(ks[1], HIDDEN, HIDDEN)
    wvT, bv = linear(ks[2], HIDDEN, HIDDEN)
    woT, bo = linear(ks[3], HIDDEN, HIDDEN)
    return dict(ln_g=jnp.ones((HIDDEN,), jnp.float32),
                ln_b=jnp.zeros((HIDDEN,), jnp.float32),
                wqT=wqT, wkT=wkT, wvT=wvT, bq=bq, bk=bk, bv=bv,
                woT=woT, bo=bo)


# ---------------- plain-JAX reference (sanity check) ----------------
def attn_block_ref(query, key, value, key_padding_mask, p):
    qn = _layernorm(query, p["ln_g"], p["ln_b"])
    qp = qn @ p["wqT"] + p["bq"]
    kp = key @ p["wkT"] + p["bk"]
    vp = value @ p["wvT"] + p["bv"]

    def split(t):
        b, s, e = t.shape
        return t.reshape(b, s, N_HEADS, HEAD_DIM).transpose(0, 2, 1, 3)

    qh, kh, vh = split(qp), split(kp), split(vp)
    scores = jnp.einsum("bhqd,bhkd->bhqk", qh, kh) / math.sqrt(HEAD_DIM)
    scores = scores + jnp.where(key_padding_mask, -1e9, 0.0)[:, None, None, :]
    attn = jax.nn.softmax(scores, axis=-1)
    o = jnp.einsum("bhqk,bhkd->bhqd", attn, vh)
    o = o.transpose(0, 2, 1, 3).reshape(query.shape)
    return o @ p["woT"] + p["bo"]


# ---------------- main ----------------
if __name__ == "__main__":
    rng = jax.random.PRNGKey(0)
    k_q, k_kv, k_p = jax.random.split(rng, 3)

    query = jax.random.normal(k_q, (B, L, HIDDEN), jnp.float32)
    kv = jax.random.normal(k_kv, (B, S, HIDDEN), jnp.float32)
    # True = padded key position (ignored by attention).
    key_padding_mask = jnp.zeros((B, S), jnp.bool_).at[1, 6:].set(True)

    params = init_params(k_p)
    slab = pack_attn_params(params)

    out = attn_block(query, kv, kv, key_padding_mask, slab)
    out = jax.block_until_ready(out)

    ref = attn_block_ref(query, kv, kv, key_padding_mask, params)
    assert out.shape == (B, L, HIDDEN)
    err = float(jnp.max(jnp.abs(out - ref)))
    # Tolerance is relaxed vs. exact math because the softmax denominator uses
    # the approximate EUP reciprocal (pl.reciprocal(..., approx=True)).
    assert err < 2e-2, f"max abs err {err}"

    print("KERNEL_OK")
</pallas_src>

<mosaic_0001>
module attributes {stable_mosaic.version = 11 : i64} {
  func.func @attn_block_kernel(%arg0: memref<16x32xf32, #tpu.memory_space<vmem>>, %arg1: memref<16x32xf32, #tpu.memory_space<vmem>>, %arg2: memref<16x32xf32, #tpu.memory_space<vmem>>, %arg3: memref<16x16xf32, #tpu.memory_space<vmem>>, %arg4: memref<136x32xf32, #tpu.memory_space<vmem>>, %arg5: memref<16x32xf32, #tpu.memory_space<vmem>>) attributes {dimension_semantics = [], scalar_prefetch = 0 : i64, scratch_operands = 0 : i64, tpu.core_type = #tpu.core_type<tc>} {
    %c0 = arith.constant 0 : index
    %c0_0 = arith.constant 0 : index
    %0 = vector.load %arg0[%c0, %c0_0] : memref<16x32xf32, #tpu.memory_space<vmem>>, vector<16x32xf32>
    %c0_1 = arith.constant 0 : index
    %c0_2 = arith.constant 0 : index
    %1 = vector.load %arg1[%c0_1, %c0_2] : memref<16x32xf32, #tpu.memory_space<vmem>>, vector<16x32xf32>
    %c0_3 = arith.constant 0 : index
    %c0_4 = arith.constant 0 : index
    %2 = vector.load %arg2[%c0_3, %c0_4] : memref<16x32xf32, #tpu.memory_space<vmem>>, vector<16x32xf32>
    %c0_5 = arith.constant 0 : index
    %c0_6 = arith.constant 0 : index
    %3 = vector.load %arg3[%c0_5, %c0_6] : memref<16x16xf32, #tpu.memory_space<vmem>>, vector<16x16xf32>
    %c0_7 = arith.constant 0 : index
    %c0_8 = arith.constant 0 : index
    %4 = vector.load %arg4[%c0_7, %c0_8] : memref<136x32xf32, #tpu.memory_space<vmem>>, vector<1x32xf32>
    %c1 = arith.constant 1 : index
    %c0_9 = arith.constant 0 : index
    %5 = vector.load %arg4[%c1, %c0_9] : memref<136x32xf32, #tpu.memory_space<vmem>>, vector<1x32xf32>
    %c2 = arith.constant 2 : index
    %c0_10 = arith.constant 0 : index
    %6 = vector.load %arg4[%c2, %c0_10] : memref<136x32xf32, #tpu.memory_space<vmem>>, vector<1x32xf32>
    %c3 = arith.constant 3 : index
    %c0_11 = arith.constant 0 : index
    %7 = vector.load %arg4[%c3, %c0_11] : memref<136x32xf32, #tpu.memory_space<vmem>>, vector<1x32xf32>
    %c4 = arith.constant 4 : index
    %c0_12 = arith.constant 0 : index
    %8 = vector.load %arg4[%c4, %c0_12] : memref<136x32xf32, #tpu.memory_space<vmem>>, vector<1x32xf32>
    %c5 = arith.constant 5 : index
    %c0_13 = arith.constant 0 : index
    %9 = vector.load %arg4[%c5, %c0_13] : memref<136x32xf32, #tpu.memory_space<vmem>>, vector<1x32xf32>
    %c8 = arith.constant 8 : index
    %c0_14 = arith.constant 0 : index
    %10 = vector.load %arg4[%c8, %c0_14] : memref<136x32xf32, #tpu.memory_space<vmem>>, vector<32x32xf32>
    %c40 = arith.constant 40 : index
    %c0_15 = arith.constant 0 : index
    %11 = vector.load %arg4[%c40, %c0_15] : memref<136x32xf32, #tpu.memory_space<vmem>>, vector<32x32xf32>
    %c72 = arith.constant 72 : index
    %c0_16 = arith.constant 0 : index
    %12 = vector.load %arg4[%c72, %c0_16] : memref<136x32xf32, #tpu.memory_space<vmem>>, vector<32x32xf32>
    %c104 = arith.constant 104 : index
    %c0_17 = arith.constant 0 : index
    %13 = vector.load %arg4[%c104, %c0_17] : memref<136x32xf32, #tpu.memory_space<vmem>>, vector<32x32xf32>
    %cst = arith.constant dense<0.000000e+00> : vector<16xf32>
    %14 = vector.multi_reduction <add>, %0, %cst [1] : vector<16x32xf32> to vector<16xf32>
    %15 = vector.shape_cast %14 : vector<16xf32> to vector<16x1xf32>
    %cst_18 = arith.constant 3.200000e+01 : f32
    %16 = vector.broadcast %cst_18 : f32 to vector<16x1xf32>
    %17 = arith.divf %15, %16 : vector<16x1xf32>
    %18 = vector.broadcast %17 : vector<16x1xf32> to vector<16x32xf32>
    %19 = arith.subf %0, %18 : vector<16x32xf32>
    %20 = arith.mulf %19, %19 : vector<16x32xf32>
    %cst_19 = arith.constant dense<0.000000e+00> : vector<16xf32>
    %21 = vector.multi_reduction <add>, %20, %cst_19 [1] : vector<16x32xf32> to vector<16xf32>
    %22 = vector.shape_cast %21 : vector<16xf32> to vector<16x1xf32>
    %cst_20 = arith.constant 3.200000e+01 : f32
    %23 = vector.broadcast %cst_20 : f32 to vector<16x1xf32>
    %24 = arith.divf %22, %23 : vector<16x1xf32>
    %25 = vector.broadcast %17 : vector<16x1xf32> to vector<16x32xf32>
    %26 = arith.subf %0, %25 : vector<16x32xf32>
    %cst_21 = arith.constant 9.99999974E-6 : f32
    %27 = vector.broadcast %cst_21 : f32 to vector<16x1xf32>
    %28 = arith.addf %24, %27 : vector<16x1xf32>
    %29 = math.rsqrt %28 : vector<16x1xf32>
    %30 = vector.broadcast %29 : vector<16x1xf32> to vector<16x32xf32>
    %31 = arith.mulf %26, %30 : vector<16x32xf32>
    %32 = vector.broadcast %4 : vector<1x32xf32> to vector<16x32xf32>
    %33 = arith.mulf %31, %32 : vector<16x32xf32>
    %34 = vector.broadcast %5 : vector<1x32xf32> to vector<16x32xf32>
    %35 = arith.addf %33, %34 : vector<16x32xf32>
    %cst_22 = arith.constant dense<0.000000e+00> : vector<16x32xf32>
    %36 = tpu.matmul %35, %10, %cst_22 {dimension_numbers = #tpu.dot_dimension_numbers<[1], [0], [0], [1], [0, 0, 1, 1], [], []>} : vector<16x32xf32>, vector<32x32xf32>, vector<16x32xf32> -> vector<16x32xf32>
    %37 = vector.broadcast %6 : vector<1x32xf32> to vector<16x32xf32>
    %38 = arith.addf %36, %37 : vector<16x32xf32>
    %cst_23 = arith.constant dense<0.000000e+00> : vector<16x32xf32>
    %39 = tpu.matmul %1, %11, %cst_23 {dimension_numbers = #tpu.dot_dimension_numbers<[1], [0], [0], [1], [0, 0, 1, 1], [], []>} : vector<16x32xf32>, vector<32x32xf32>, vector<16x32xf32> -> vector<16x32xf32>
    %40 = vector.broadcast %7 : vector<1x32xf32> to vector<16x32xf32>
    %41 = arith.addf %39, %40 : vector<16x32xf32>
    %cst_24 = arith.constant dense<0.000000e+00> : vector<16x32xf32>
    %42 = tpu.matmul %2, %12, %cst_24 {dimension_numbers = #tpu.dot_dimension_numbers<[1], [0], [0], [1], [0, 0, 1, 1], [], []>} : vector<16x32xf32>, vector<32x32xf32>, vector<16x32xf32> -> vector<16x32xf32>
    %43 = vector.broadcast %8 : vector<1x32xf32> to vector<16x32xf32>
    %44 = arith.addf %42, %43 : vector<16x32xf32>
    %45 = vector.extract_strided_slice %38 {offsets = [0, 0], sizes = [16, 8], strides = [1, 1]} : vector<16x32xf32> to vector<16x8xf32>
    %46 = vector.extract_strided_slice %41 {offsets = [0, 0], sizes = [16, 8], strides = [1, 1]} : vector<16x32xf32> to vector<16x8xf32>
    %47 = vector.extract_strided_slice %44 {offsets = [0, 0], sizes = [16, 8], strides = [1, 1]} : vector<16x32xf32> to vector<16x8xf32>
    %cst_25 = arith.constant dense<0.000000e+00> : vector<16x16xf32>
    %48 = tpu.matmul %45, %46, %cst_25 {dimension_numbers = #tpu.dot_dimension_numbers<[1], [1], [0], [0], [0, 0, 1, 0], [], []>} : vector<16x8xf32>, vector<16x8xf32>, vector<16x16xf32> -> vector<16x16xf32>
    %49 = arith.addf %48, %3 : vector<16x16xf32>
    %cst_26 = arith.constant dense<0xFF800000> : vector<16xf32>
    %50 = vector.multi_reduction <maximumf>, %49, %cst_26 [1] : vector<16x16xf32> to vector<16xf32>
    %51 = vector.shape_cast %50 : vector<16xf32> to vector<16x1xf32>
    %52 = vector.broadcast %51 : vector<16x1xf32> to vector<16x16xf32>
    %53 = arith.subf %49, %52 : vector<16x16xf32>
    %54 = math.exp %53 : vector<16x16xf32>
    %cst_27 = arith.constant dense<0.000000e+00> : vector<16xf32>
    %55 = vector.multi_reduction <add>, %54, %cst_27 [1] : vector<16x16xf32> to vector<16xf32>
    %56 = vector.shape_cast %55 : vector<16xf32> to vector<16x1xf32>
    %57 = tpu.reciprocal %56 {approx = true} : vector<16x1xf32> -> vector<16x1xf32>
    %58 = vector.broadcast %57 : vector<16x1xf32> to vector<16x16xf32>
    %59 = arith.mulf %54, %58 : vector<16x16xf32>
    %cst_28 = arith.constant dense<0.000000e+00> : vector<16x8xf32>
    %60 = tpu.matmul %59, %47, %cst_28 {dimension_numbers = #tpu.dot_dimension_numbers<[1], [0], [0], [1], [0, 0, 1, 1], [], []>} : vector<16x16xf32>, vector<16x8xf32>, vector<16x8xf32> -> vector<16x8xf32>
    %61 = vector.extract_strided_slice %38 {offsets = [0, 8], sizes = [16, 8], strides = [1, 1]} : vector<16x32xf32> to vector<16x8xf32>
    %62 = vector.extract_strided_slice %41 {offsets = [0, 8], sizes = [16, 8], strides = [1, 1]} : vector<16x32xf32> to vector<16x8xf32>
    %63 = vector.extract_strided_slice %44 {offsets = [0, 8], sizes = [16, 8], strides = [1, 1]} : vector<16x32xf32> to vector<16x8xf32>
    %cst_29 = arith.constant dense<0.000000e+00> : vector<16x16xf32>
    %64 = tpu.matmul %61, %62, %cst_29 {dimension_numbers = #tpu.dot_dimension_numbers<[1], [1], [0], [0], [0, 0, 1, 0], [], []>} : vector<16x8xf32>, vector<16x8xf32>, vector<16x16xf32> -> vector<16x16xf32>
    %65 = arith.addf %64, %3 : vector<16x16xf32>
    %cst_30 = arith.constant dense<0xFF800000> : vector<16xf32>
    %66 = vector.multi_reduction <maximumf>, %65, %cst_30 [1] : vector<16x16xf32> to vector<16xf32>
    %67 = vector.shape_cast %66 : vector<16xf32> to vector<16x1xf32>
    %68 = vector.broadcast %67 : vector<16x1xf32> to vector<16x16xf32>
    %69 = arith.subf %65, %68 : vector<16x16xf32>
    %70 = math.exp %69 : vector<16x16xf32>
    %cst_31 = arith.constant dense<0.000000e+00> : vector<16xf32>
    %71 = vector.multi_reduction <add>, %70, %cst_31 [1] : vector<16x16xf32> to vector<16xf32>
    %72 = vector.shape_cast %71 : vector<16xf32> to vector<16x1xf32>
    %73 = tpu.reciprocal %72 {approx = true} : vector<16x1xf32> -> vector<16x1xf32>
    %74 = vector.broadcast %73 : vector<16x1xf32> to vector<16x16xf32>
    %75 = arith.mulf %70, %74 : vector<16x16xf32>
    %cst_32 = arith.constant dense<0.000000e+00> : vector<16x8xf32>
    %76 = tpu.matmul %75, %63, %cst_32 {dimension_numbers = #tpu.dot_dimension_numbers<[1], [0], [0], [1], [0, 0, 1, 1], [], []>} : vector<16x16xf32>, vector<16x8xf32>, vector<16x8xf32> -> vector<16x8xf32>
    %77 = vector.extract_strided_slice %38 {offsets = [0, 16], sizes = [16, 8], strides = [1, 1]} : vector<16x32xf32> to vector<16x8xf32>
    %78 = vector.extract_strided_slice %41 {offsets = [0, 16], sizes = [16, 8], strides = [1, 1]} : vector<16x32xf32> to vector<16x8xf32>
    %79 = vector.extract_strided_slice %44 {offsets = [0, 16], sizes = [16, 8], strides = [1, 1]} : vector<16x32xf32> to vector<16x8xf32>
    %cst_33 = arith.constant dense<0.000000e+00> : vector<16x16xf32>
    %80 = tpu.matmul %77, %78, %cst_33 {dimension_numbers = #tpu.dot_dimension_numbers<[1], [1], [0], [0], [0, 0, 1, 0], [], []>} : vector<16x8xf32>, vector<16x8xf32>, vector<16x16xf32> -> vector<16x16xf32>
    %81 = arith.addf %80, %3 : vector<16x16xf32>
    %cst_34 = arith.constant dense<0xFF800000> : vector<16xf32>
    %82 = vector.multi_reduction <maximumf>, %81, %cst_34 [1] : vector<16x16xf32> to vector<16xf32>
    %83 = vector.shape_cast %82 : vector<16xf32> to vector<16x1xf32>
    %84 = vector.broadcast %83 : vector<16x1xf32> to vector<16x16xf32>
    %85 = arith.subf %81, %84 : vector<16x16xf32>
    %86 = math.exp %85 : vector<16x16xf32>
    %cst_35 = arith.constant dense<0.000000e+00> : vector<16xf32>
    %87 = vector.multi_reduction <add>, %86, %cst_35 [1] : vector<16x16xf32> to vector<16xf32>
    %88 = vector.shape_cast %87 : vector<16xf32> to vector<16x1xf32>
    %89 = tpu.reciprocal %88 {approx = true} : vector<16x1xf32> -> vector<16x1xf32>
    %90 = vector.broadcast %89 : vector<16x1xf32> to vector<16x16xf32>
    %91 = arith.mulf %86, %90 : vector<16x16xf32>
    %cst_36 = arith.constant dense<0.000000e+00> : vector<16x8xf32>
    %92 = tpu.matmul %91, %79, %cst_36 {dimension_numbers = #tpu.dot_dimension_numbers<[1], [0], [0], [1], [0, 0, 1, 1], [], []>} : vector<16x16xf32>, vector<16x8xf32>, vector<16x8xf32> -> vector<16x8xf32>
    %93 = vector.extract_strided_slice %38 {offsets = [0, 24], sizes = [16, 8], strides = [1, 1]} : vector<16x32xf32> to vector<16x8xf32>
    %94 = vector.extract_strided_slice %41 {offsets = [0, 24], sizes = [16, 8], strides = [1, 1]} : vector<16x32xf32> to vector<16x8xf32>
    %95 = vector.extract_strided_slice %44 {offsets = [0, 24], sizes = [16, 8], strides = [1, 1]} : vector<16x32xf32> to vector<16x8xf32>
    %cst_37 = arith.constant dense<0.000000e+00> : vector<16x16xf32>
    %96 = tpu.matmul %93, %94, %cst_37 {dimension_numbers = #tpu.dot_dimension_numbers<[1], [1], [0], [0], [0, 0, 1, 0], [], []>} : vector<16x8xf32>, vector<16x8xf32>, vector<16x16xf32> -> vector<16x16xf32>
    %97 = arith.addf %96, %3 : vector<16x16xf32>
    %cst_38 = arith.constant dense<0xFF800000> : vector<16xf32>
    %98 = vector.multi_reduction <maximumf>, %97, %cst_38 [1] : vector<16x16xf32> to vector<16xf32>
    %99 = vector.shape_cast %98 : vector<16xf32> to vector<16x1xf32>
    %100 = vector.broadcast %99 : vector<16x1xf32> to vector<16x16xf32>
    %101 = arith.subf %97, %100 : vector<16x16xf32>
    %102 = math.exp %101 : vector<16x16xf32>
    %cst_39 = arith.constant dense<0.000000e+00> : vector<16xf32>
    %103 = vector.multi_reduction <add>, %102, %cst_39 [1] : vector<16x16xf32> to vector<16xf32>
    %104 = vector.shape_cast %103 : vector<16xf32> to vector<16x1xf32>
    %105 = tpu.reciprocal %104 {approx = true} : vector<16x1xf32> -> vector<16x1xf32>
    %106 = vector.broadcast %105 : vector<16x1xf32> to vector<16x16xf32>
    %107 = arith.mulf %102, %106 : vector<16x16xf32>
    %cst_40 = arith.constant dense<0.000000e+00> : vector<16x8xf32>
    %108 = tpu.matmul %107, %95, %cst_40 {dimension_numbers = #tpu.dot_dimension_numbers<[1], [0], [0], [1], [0, 0, 1, 1], [], []>} : vector<16x16xf32>, vector<16x8xf32>, vector<16x8xf32> -> vector<16x8xf32>
    %109 = tpu.concatenate %60, %76, %92, %108 in 1 : vector<16x8xf32>, vector<16x8xf32>, vector<16x8xf32>, vector<16x8xf32> -> vector<16x32xf32>
    %cst_41 = arith.constant dense<0.000000e+00> : vector<16x32xf32>
    %110 = tpu.matmul %109, %13, %cst_41 {dimension_numbers = #tpu.dot_dimension_numbers<[1], [0], [0], [1], [0, 0, 1, 1], [], []>} : vector<16x32xf32>, vector<32x32xf32>, vector<16x32xf32> -> vector<16x32xf32>
    %111 = vector.broadcast %9 : vector<1x32xf32> to vector<16x32xf32>
    %112 = arith.addf %110, %111 : vector<16x32xf32>
    %c0_42 = arith.constant 0 : index
    %c0_43 = arith.constant 0 : index
    %113 = vector.load %arg5[%c0_42, %c0_43] : memref<16x32xf32, #tpu.memory_space<vmem>>, vector<16x32xf32>
    tpu.vector_store %arg5[%c0_42, %c0_43], %112 {strides = array<i32>} : memref<16x32xf32, #tpu.memory_space<vmem>>, vector<16x32xf32>,
    return
  }
}

</mosaic_0001>

<llo_original>
// kernel: tpu_custom_call.1
$region0: #{tpu_custom_call.1}
  #allocation0 [shape = 'u32[]', space=smem, size = 0x4, offset = 0x4, fixed_abs, tag = 'smem constant byte address 0x4 - core index']
  #allocation1 [shape = 'u32[144,128]{1,0:T(1,128)}', space=vmem, size = 0x12000, scoped, tag = 'internal scratch']
  %s0 = inlined_call_operand.vmem [shape: f32[16,32], index: 0, kind: input, shape index: {}]
  %s1 = inlined_call_operand.vmem [shape: f32[16,32], index: 1, kind: input, shape index: {}]
  %s2 = inlined_call_operand.vmem [shape: f32[16,32], index: 2, kind: input, shape index: {}]
  %s3 = inlined_call_operand.vmem [shape: f32[16,16], index: 3, kind: input, shape index: {}]
  %s4 = inlined_call_operand.vmem [shape: f32[136,32], index: 4, kind: input, shape index: {}]
  %s5 = inlined_call_operand.hbm [shape: f32[16,32], index: 5, kind: output, shape index: {}]
  %s6 = sld [smem:[#allocation0]]
  $region30: #{tpu_custom_call.1} parent=0
    _
  %s8 = ssub.s32 1, %s6
  %s9 = scalar_select 0, %s8, %s6
  $region1: #{tpu_custom_call.1} parent=0
    #allocation2 [shape = 'u8[8192]{0}', space=vmem, size = 0x2000, scoped, tag = 'output window, operand 0, single buffered']
    #allocation3 [shape = 's32[1]{0}', space=sflag, size = 0x4, scoped, tag = 'scoped memory for tpu_custom_call.1']
    %10 = vsyncpa [#allocation3], 0
    // Predicated region
    $region2: #{tpu_custom_call.1} parent=1 // pred_check
      _
    $region3: #{tpu_custom_call.1} parent=1 // pred_check_branch
      %12 = sbr.rel (0) target = $region5
    $region4: #{tpu_custom_call.1} parent=1 // pred_region
      _
    $region5: #{tpu_custom_call.1} parent=1 // pred_fallthru
      _
    // Predicated region
    $region6: #{tpu_custom_call.1} parent=1 // pred_check
      _
    $region7: #{tpu_custom_call.1} parent=1 // pred_check_branch
      %14 = sbr.rel (0) target = $region9
    $region8: #{tpu_custom_call.1} parent=1 // pred_region
      _
    $region9: #{tpu_custom_call.1} parent=1 // pred_fallthru
      _
    // Predicated region
    $region10: #{tpu_custom_call.1} parent=1 // pred_check
      _
    $region11: #{tpu_custom_call.1} parent=1 // pred_check_branch
      %16 = sbr.rel (0) target = $region13
    $region12: #{tpu_custom_call.1} parent=1 // pred_region
      _
    $region13: #{tpu_custom_call.1} parent=1 // pred_fallthru
      _
    // Predicated region
    $region14: #{tpu_custom_call.1} parent=1 // pred_check
      _
    $region15: #{tpu_custom_call.1} parent=1 // pred_check_branch
      %18 = sbr.rel (0) target = $region17
    $region16: #{tpu_custom_call.1} parent=1 // pred_region
      _
    $region17: #{tpu_custom_call.1} parent=1 // pred_fallthru
      _
    // Predicated region
    $region18: #{tpu_custom_call.1} parent=1 // pred_check
      _
    $region19: #{tpu_custom_call.1} parent=1 // pred_check_branch
      %20 = sbr.rel (0) target = $region21
    $region20: #{tpu_custom_call.1} parent=1 // pred_region
      _
    $region21: #{tpu_custom_call.1} parent=1 // pred_fallthru
      _
    %v21 = vld [vmem:[%s0] sm:$0xff]
    %v22 = vld [vmem:[%s0 + $0x8] sm:$0xff]
    %v23 = vld [vmem:[%s1] sm:$0xff]
    %v24 = vld [vmem:[%s1 + $0x8] sm:$0xff]
    %v25 = vld [vmem:[%s2] sm:$0xff]
    %v26 = vld [vmem:[%s2 + $0x8] sm:$0xff]
    %v27 = vld [vmem:[%s3] sm:$0xff]
    %v28 = vld [vmem:[%s3 + $0x8] sm:$0xff]
    %v29 = vld [vmem:[%s4] sm:$0x1]
    %v30 = vld [vmem:[%s4 + $0x1] sm:$0x1]
    %v31 = vld [vmem:[%s4 + $0x2] sm:$0x1]
    %v32 = vld [vmem:[%s4 + $0x3] sm:$0x1]
    %v33 = vld [vmem:[%s4 + $0x4] sm:$0x1]
    %v34 = vld [vmem:[%s4 + $0x5] sm:$0x1]
    %v35 = vld [vmem:[%s4 + $0x8] sm:$0xff]
    %v36 = vld [vmem:[%s4 + $0x10] sm:$0xff]
    %v37 = vld [vmem:[%s4 + $0x18] sm:$0xff]
    %v38 = vld [vmem:[%s4 + $0x20] sm:$0xff]
    %v39 = vld [vmem:[%s4 + $0x28] sm:$0xff]
    %v40 = vld [vmem:[%s4 + $0x30] sm:$0xff]
    %v41 = vld [vmem:[%s4 + $0x38] sm:$0xff]
    %v42 = vld [vmem:[%s4 + $0x40] sm:$0xff]
    %v43 = vld [vmem:[%s4 + $0x48] sm:$0xff]
    %v44 = vld [vmem:[%s4 + $0x50] sm:$0xff]
    %v45 = vld [vmem:[%s4 + $0x58] sm:$0xff]
    %v46 = vld [vmem:[%s4 + $0x60] sm:$0xff]
    %v47 = vld [vmem:[%s4 + $0x68] sm:$0xff]
    %v48 = vld [vmem:[%s4 + $0x70] sm:$0xff]
    %v49 = vld [vmem:[%s4 + $0x78] sm:$0xff]
    %v50 = vld [vmem:[%s4 + $0x80] sm:$0xff]
    %vm51 = vcmask 261120
    %v52 = vsel %vm51, %v21, 0.0
    %53 = vadd.xlane.f32.xlu0 %v52
    %v54 = vpop.xlane.xlu0 %53
    %v55 = vsel %vm51, %v22, 0.0
    %56 = vadd.xlane.f32.xlu0 %v55
    %v57 = vpop.xlane.xlu0 %56
    %v58 = vrcp.pop 32.0
    %v59 = vmul.f32 %v54, %v58
    %v60 = vmul.f32 %v57, %v58
    %v61 = vsub.f32 %v21, %v59
    %v62 = vsub.f32 %v22, %v60
    %v63 = vmul.f32 %v61, %v61
    %v64 = vmul.f32 %v62, %v62
    %v65 = vsel %vm51, %v63, 0.0
    %66 = vadd.xlane.f32.xlu0 %v65
    %v67 = vpop.xlane.xlu0 %66
    %v68 = vsel %vm51, %v64, 0.0
    %69 = vadd.xlane.f32.xlu0 %v68
    %v70 = vpop.xlane.xlu0 %69
    %v71 = vmul.f32 %v67, %v58
    %v72 = vmul.f32 %v70, %v58
    %v73 = vadd.f32 %v71, 1e-05
    %v74 = vadd.f32 %v72, 1e-05
    %v75 = vrsqrt.pop %v73
    %v76 = vrsqrt.pop %v74
    %v77 = vmul.f32 %v61, %v75
    %v78 = vmul.f32 %v62, %v76
    %v79 = vlaneseq
    %v80 = vshrl.u32 %v79, 7
    %v81 = vsub.s32 0, %v80
    %v82 = vrot.slane %v29, %v81
    %v83 = vmul.f32 %v77, %v82
    %v84 = vmul.f32 %v78, %v82
    %v85 = vlaneseq
    %v86 = vshrl.u32 %v85, 7
    %v87 = vsub.s32 0, %v86
    %v88 = vrot.slane %v30, %v87
    %v89 = vadd.f32 %v83, %v88
    %v90 = vadd.f32 %v84, %v88
    %v91 = vlaneseq
    %v92 = vshrl.u32 %v91, 7
    %v93 = vsub.s32 0, %v92
    %v94 = vrot.slane %v31, %v93
    %v96 = vsel %vm51, %v89, 0
    %v99 = vsel %vm51, %v90, 0
    %101 = vmatprep.subr.mxu0 0.0
    %102 = vmatpush1.msra.mxu0 0.0
    %103 = vmatprep.subr.mxu0 0.0
    %104 = vmatpush1.msra.mxu0 0.0
    %105 = vmatprep.subr.mxu0 0.0
    %106 = vmatpush1.msra.mxu0 0.0
    %107 = vmatprep.subr.mxu0 0.0
    %108 = vmatpush1.msra.mxu0 0.0
    %109 = vmatprep.subr.mxu0 0.0
    %110 = vmatpush1.msra.mxu0 0.0
    %111 = vmatprep.subr.mxu0 0.0
    %112 = vmatpush1.msra.mxu0 0.0
    %113 = vmatprep.subr.mxu0 0.0
    %114 = vmatpush1.msra.mxu0 0.0
    %115 = vmatprep.subr.mxu0 0.0
    %116 = vmatpush1.msra.mxu0 0.0
    %117 = vmatprep.subr.mxu0 0.0
    %118 = vmatpush1.msra.mxu0 0.0
    %119 = vmatprep.subr.mxu0 0.0
    %120 = vmatpush1.msra.mxu0 0.0
    %121 = vmatprep.subr.mxu0 0.0
    %122 = vmatpush1.msra.mxu0 0.0
    %123 = vmatprep.subr.mxu0 0.0
    %124 = vmatpush1.msra.mxu0 0.0
    %125 = vmatprep.subr.mxu0 0.0
    %126 = vmatpush1.msra.mxu0 %v38
    %127 = vmatprep.subr.mxu0 0.0
    %128 = vmatpush1.msra.mxu0 %v37
    %129 = vmatprep.subr.mxu0 0.0
    %130 = vmatpush1.msra.mxu0 %v36
    %131 = vmatprep.subr.mxu0 0.0
    %132 = vmatpush1.msra.mxu0 %v35
    %133 = vmatprep.subr.mxu0 0.0
    %134 = vmatpush2.msra.mxu0 0.0
    %135 = vmatprep.subr.mxu0 0.0
    %136 = vmatpush2.msra.mxu0 0.0
    %137 = vmatprep.subr.mxu0 0.0
    %138 = vmatpush2.msra.mxu0 0.0
    %139 = vmatprep.subr.mxu0 0.0
    %140 = vmatpush2.msra.mxu0 0.0
    %141 = vmatprep.subr.mxu0 0.0
    %142 = vmatpush2.msra.mxu0 0.0
    %143 = vmatprep.subr.mxu0 0.0
    %144 = vmatpush2.msra.mxu0 0.0
    %145 = vmatprep.subr.mxu0 0.0
    %146 = vmatpush2.msra.mxu0 0.0
    %147 = vmatprep.subr.mxu0 0.0
    %148 = vmatpush2.msra.mxu0 0.0
    %149 = vmatprep.subr.mxu0 0.0
    %150 = vmatpush2.msra.mxu0 0.0
    %151 = vmatprep.subr.mxu0 0.0
    %152 = vmatpush2.msra.mxu0 0.0
    %153 = vmatprep.subr.mxu0 0.0
    %154 = vmatpush2.msra.mxu0 0.0
    %155 = vmatprep.subr.mxu0 0.0
    %156 = vmatpush2.msra.mxu0 0.0
    %157 = vmatprep.subr.mxu0 0.0
    %158 = vmatpush2.msra.mxu0 0.0
    %159 = vmatprep.subr.mxu0 0.0
    %160 = vmatpush2.msra.mxu0 0.0
    %161 = vmatprep.subr.mxu0 0.0
    %162 = vmatpush2.msra.mxu0 0.0
    %163 = vmatprep.subr.mxu0 0.0
    %164 = vmatpush2.msra.mxu0 0.0
    %165 = vmatprep.mubr.f32.mxu0 0.0
    %166 = vmatmul.mubr.f32.gmra.mxu0 %v96
    %v167 = vpop.f32.mrf.mxu0
    %v168 = vadd.f32 %v94, %v167
    %v169 = vpop.f32.mrf.mxu0
    %170 = vmatprep.mubr.f32.mxu0 0.0
    %171 = vmatmul.mubr.f32.gmra.mxu0 %v99
    %v172 = vpop.f32.mrf.mxu0
    %v173 = vadd.f32 %v94, %v172
    %v174 = vpop.f32.mrf.mxu0
    %175 = vdwg.mxu0
    %v176 = vlaneseq
    %v177 = vshrl.u32 %v176, 7
    %v178 = vsub.s32 0, %v177
    %v179 = vrot.slane %v32, %v178
    %v181 = vsel %vm51, %v23, 0
    %v184 = vsel %vm51, %v24, 0
    %186 = vmatprep.subr.mxu0 0.0
    %187 = vmatpush1.msra.mxu0 0.0
    %188 = vmatprep.subr.mxu0 0.0
    %189 = vmatpush1.msra.mxu0 0.0
    %190 = vmatprep.subr.mxu0 0.0
    %191 = vmatpush1.msra.mxu0 0.0
    %192 = vmatprep.subr.mxu0 0.0
    %193 = vmatpush1.msra.mxu0 0.0
    %194 = vmatprep.subr.mxu0 0.0
    %195 = vmatpush1.msra.mxu0 0.0
    %196 = vmatprep.subr.mxu0 0.0
    %197 = vmatpush1.msra.mxu0 0.0
    %198 = vmatprep.subr.mxu0 0.0
    %199 = vmatpush1.msra.mxu0 0.0
    %200 = vmatprep.subr.mxu0 0.0
    %201 = vmatpush1.msra.mxu0 0.0
    %202 = vmatprep.subr.mxu0 0.0
    %203 = vmatpush1.msra.mxu0 0.0
    %204 = vmatprep.subr.mxu0 0.0
    %205 = vmatpush1.msra.mxu0 0.0
    %206 = vmatprep.subr.mxu0 0.0
    %207 = vmatpush1.msra.mxu0 0.0
    %208 = vmatprep.subr.mxu0 0.0
    %209 = vmatpush1.msra.mxu0 0.0
    %210 = vmatprep.subr.mxu0 0.0
    %211 = vmatpush1.msra.mxu0 %v42
    %212 = vmatprep.subr.mxu0 0.0
    %213 = vmatpush1.msra.mxu0 %v41
    %214 = vmatprep.subr.mxu0 0.0
    %215 = vmatpush1.msra.mxu0 %v40
    %216 = vmatprep.subr.mxu0 0.0
    %217 = vmatpush1.msra.mxu0 %v39
    %218 = vmatprep.subr.mxu0 0.0
    %219 = vmatpush2.msra.mxu0 0.0
    %220 = vmatprep.subr.mxu0 0.0
    %221 = vmatpush2.msra.mxu0 0.0
    %222 = vmatprep.subr.mxu0 0.0
    %223 = vmatpush2.msra.mxu0 0.0
    %224 = vmatprep.subr.mxu0 0.0
    %225 = vmatpush2.msra.mxu0 0.0
    %226 = vmatprep.subr.mxu0 0.0
    %227 = vmatpush2.msra.mxu0 0.0
    %228 = vmatprep.subr.mxu0 0.0
    %229 = vmatpush2.msra.mxu0 0.0
    %230 = vmatprep.subr.mxu0 0.0
    %231 = vmatpush2.msra.mxu0 0.0
    %232 = vmatprep.subr.mxu0 0.0
    %233 = vmatpush2.msra.mxu0 0.0
    %234 = vmatprep.subr.mxu0 0.0
    %235 = vmatpush2.msra.mxu0 0.0
    %236 = vmatprep.subr.mxu0 0.0
    %237 = vmatpush2.msra.mxu0 0.0
    %238 = vmatprep.subr.mxu0 0.0
    %239 = vmatpush2.msra.mxu0 0.0
    %240 = vmatprep.subr.mxu0 0.0
    %241 = vmatpush2.msra.mxu0 0.0
    %242 = vmatprep.subr.mxu0 0.0
    %243 = vmatpush2.msra.mxu0 0.0
    %244 = vmatprep.subr.mxu0 0.0
    %245 = vmatpush2.msra.mxu0 0.0
    %246 = vmatprep.subr.mxu0 0.0
    %247 = vmatpush2.msra.mxu0 0.0
    %248 = vmatprep.subr.mxu0 0.0
    %249 = vmatpush2.msra.mxu0 0.0
    %250 = vmatprep.mubr.f32.mxu0 0.0
    %251 = vmatmul.mubr.f32.gmra.mxu0 %v181
    %v252 = vpop.f32.mrf.mxu0
    %v253 = vadd.f32 %v179, %v252
    %v254 = vpop.f32.mrf.mxu0
    %255 = vmatprep.mubr.f32.mxu0 0.0
    %256 = vmatmul.mubr.f32.gmra.mxu0 %v184
    %v257 = vpop.f32.mrf.mxu0
    %v258 = vadd.f32 %v179, %v257
    %v259 = vpop.f32.mrf.mxu0
    %260 = vdwg.mxu0
    %v261 = vlaneseq
    %v262 = vshrl.u32 %v261, 7
    %v263 = vsub.s32 0, %v262
    %v264 = vrot.slane %v33, %v263
    %v266 = vsel %vm51, %v25, 0
    %v269 = vsel %vm51, %v26, 0
    %271 = vmatprep.subr.mxu0 0.0
    %272 = vmatpush1.msra.mxu0 0.0
    %273 = vmatprep.subr.mxu0 0.0
    %274 = vmatpush1.msra.mxu0 0.0
    %275 = vmatprep.subr.mxu0 0.0
    %276 = vmatpush1.msra.mxu0 0.0
    %277 = vmatprep.subr.mxu0 0.0
    %278 = vmatpush1.msra.mxu0 0.0
    %279 = vmatprep.subr.mxu0 0.0
    %280 = vmatpush1.msra.mxu0 0.0
    %281 = vmatprep.subr.mxu0 0.0
    %282 = vmatpush1.msra.mxu0 0.0
    %283 = vmatprep.subr.mxu0 0.0
    %284 = vmatpush1.msra.mxu0 0.0
    %285 = vmatprep.subr.mxu0 0.0
    %286 = vmatpush1.msra.mxu0 0.0
    %287 = vmatprep.subr.mxu0 0.0
    %288 = vmatpush1.msra.mxu0 0.0
    %289 = vmatprep.subr.mxu0 0.0
    %290 = vmatpush1.msra.mxu0 0.0
    %291 = vmatprep.subr.mxu0 0.0
    %292 = vmatpush1.msra.mxu0 0.0
    %293 = vmatprep.subr.mxu0 0.0
    %294 = vmatpush1.msra.mxu0 0.0
    %295 = vmatprep.subr.mxu0 0.0
    %296 = vmatpush1.msra.mxu0 %v46
    %297 = vmatprep.subr.mxu0 0.0
    %298 = vmatpush1.msra.mxu0 %v45
    %299 = vmatprep.subr.mxu0 0.0
    %300 = vmatpush1.msra.mxu0 %v44
    %301 = vmatprep.subr.mxu0 0.0
    %302 = vmatpush1.msra.mxu0 %v43
    %303 = vmatprep.subr.mxu0 0.0
    %304 = vmatpush2.msra.mxu0 0.0
    %305 = vmatprep.subr.mxu0 0.0
    %306 = vmatpush2.msra.mxu0 0.0
    %307 = vmatprep.subr.mxu0 0.0
    %308 = vmatpush2.msra.mxu0 0.0
    %309 = vmatprep.subr.mxu0 0.0
    %310 = vmatpush2.msra.mxu0 0.0
    %311 = vmatprep.subr.mxu0 0.0
    %312 = vmatpush2.msra.mxu0 0.0
    %313 = vmatprep.subr.mxu0 0.0
    %314 = vmatpush2.msra.mxu0 0.0
    %315 = vmatprep.subr.mxu0 0.0
    %316 = vmatpush2.msra.mxu0 0.0
    %317 = vmatprep.subr.mxu0 0.0
    %318 = vmatpush2.msra.mxu0 0.0
    %319 = vmatprep.subr.mxu0 0.0
    %320 = vmatpush2.msra.mxu0 0.0
    %321 = vmatprep.subr.mxu0 0.0
    %322 = vmatpush2.msra.mxu0 0.0
    %323 = vmatprep.subr.mxu0 0.0
    %324 = vmatpush2.msra.mxu0 0.0
    %325 = vmatprep.subr.mxu0 0.0
    %326 = vmatpush2.msra.mxu0 0.0
    %327 = vmatprep.subr.mxu0 0.0
    %328 = vmatpush2.msra.mxu0 0.0
    %329 = vmatprep.subr.mxu0 0.0
    %330 = vmatpush2.msra.mxu0 0.0
    %331 = vmatprep.subr.mxu0 0.0
    %332 = vmatpush2.msra.mxu0 0.0
    %333 = vmatprep.subr.mxu0 0.0
    %334 = vmatpush2.msra.mxu0 0.0
    %335 = vmatprep.mubr.f32.mxu0 0.0
    %336 = vmatmul.mubr.f32.gmra.mxu0 %v266
    %v337 = vpop.f32.mrf.mxu0
    %v338 = vadd.f32 %v264, %v337
    %v339 = vpop.f32.mrf.mxu0
    %340 = vmatprep.mubr.f32.mxu0 0.0
    %341 = vmatmul.mubr.f32.gmra.mxu0 %v269
    %v342 = vpop.f32.mrf.mxu0
    %v343 = vadd.f32 %v264, %v342
    %v344 = vpop.f32.mrf.mxu0
    %345 = vdwg.mxu0
    %vm346 = vcmask 64512
    %v348 = vsel %vm346, %v168, 0
    %v351 = vsel %vm346, %v173, 0
    %v354 = vsel %vm346, %v253, 0
    %v357 = vsel %vm346, %v258, 0
    %359 = vmatprep.subr.mxu0 0.0
    %360 = vmatpush1.xpose.msra.mxu0 0.0
    %361 = vmatprep.subr.mxu0 0.0
    %362 = vmatpush1.xpose.msra.mxu0 0.0
    %363 = vmatprep.subr.mxu0 0.0
    %364 = vmatpush1.xpose.msra.mxu0 0.0
    %365 = vmatprep.subr.mxu0 0.0
    %366 = vmatpush1.xpose.msra.mxu0 0.0
    %367 = vmatprep.subr.mxu0 0.0
    %368 = vmatpush1.xpose.msra.mxu0 0.0
    %369 = vmatprep.subr.mxu0 0.0
    %370 = vmatpush1.xpose.msra.mxu0 0.0
    %371 = vmatprep.subr.mxu0 0.0
    %372 = vmatpush1.xpose.msra.mxu0 0.0
    %373 = vmatprep.subr.mxu0 0.0
    %374 = vmatpush1.xpose.msra.mxu0 0.0
    %375 = vmatprep.subr.mxu0 0.0
    %376 = vmatpush1.xpose.msra.mxu0 0.0
    %377 = vmatprep.subr.mxu0 0.0
    %378 = vmatpush1.xpose.msra.mxu0 0.0
    %379 = vmatprep.subr.mxu0 0.0
    %380 = vmatpush1.xpose.msra.mxu0 0.0
    %381 = vmatprep.subr.mxu0 0.0
    %382 = vmatpush1.xpose.msra.mxu0 0.0
    %383 = vmatprep.subr.mxu0 0.0
    %384 = vmatpush1.xpose.msra.mxu0 0.0
    %385 = vmatprep.subr.mxu0 0.0
    %386 = vmatpush1.xpose.msra.mxu0 0.0
    %387 = vmatprep.subr.mxu0 0.0
    %388 = vmatpush1.xpose.msra.mxu0 %v357
    %389 = vmatprep.subr.mxu0 0.0
    %390 = vmatpush1.xpose.msra.mxu0 %v354
    %391 = vmatprep.subr.mxu0 0.0
    %392 = vmatpush2.xpose.msra.mxu0 0.0
    %393 = vmatprep.subr.mxu0 0.0
    %394 = vmatpush2.xpose.msra.mxu0 0.0
    %395 = vmatprep.subr.mxu0 0.0
    %396 = vmatpush2.xpose.msra.mxu0 0.0
    %397 = vmatprep.subr.mxu0 0.0
    %398 = vmatpush2.xpose.msra.mxu0 0.0
    %399 = vmatprep.subr.mxu0 0.0
    %400 = vmatpush2.xpose.msra.mxu0 0.0
    %401 = vmatprep.subr.mxu0 0.0
    %402 = vmatpush2.xpose.msra.mxu0 0.0
    %403 = vmatprep.subr.mxu0 0.0
    %404 = vmatpush2.xpose.msra.mxu0 0.0
    %405 = vmatprep.subr.mxu0 0.0
    %406 = vmatpush2.xpose.msra.mxu0 0.0
    %407 = vmatprep.subr.mxu0 0.0
    %408 = vmatpush2.xpose.msra.mxu0 0.0
    %409 = vmatprep.subr.mxu0 0.0
    %410 = vmatpush2.xpose.msra.mxu0 0.0
    %411 = vmatprep.subr.mxu0 0.0
    %412 = vmatpush2.xpose.msra.mxu0 0.0
    %413 = vmatprep.subr.mxu0 0.0
    %414 = vmatpush2.xpose.msra.mxu0 0.0
    %415 = vmatprep.subr.mxu0 0.0
    %416 = vmatpush2.xpose.msra.mxu0 0.0
    %417 = vmatprep.subr.mxu0 0.0
    %418 = vmatpush2.xpose.msra.mxu0 0.0
    %419 = vmatprep.subr.mxu0 0.0
    %420 = vmatpush2.xpose.msra.mxu0 0.0
    %421 = vmatprep.subr.mxu0 0.0
    %422 = vmatpush2.xpose.msra.mxu0 0.0
    %423 = vmatprep.mubr.f32.mxu0 0.0
    %424 = vmatmul.mubr.f32.gmra.mxu0 %v348
    %v425 = vpop.f32.mrf.mxu0
    %v426 = vadd.f32 %v27, %v425
    %v427 = vpop.f32.mrf.mxu0
    %428 = vmatprep.mubr.f32.mxu0 0.0
    %429 = vmatmul.mubr.f32.gmra.mxu0 %v351
    %v430 = vpop.f32.mrf.mxu0
    %v431 = vadd.f32 %v28, %v430
    %v432 = vpop.f32.mrf.mxu0
    %433 = vdwg.mxu0
    %vm434 = vcmask 130048
    %v435 = vsel %vm434, %v426, -inf
    %436 = vmax.xlane.f32.xlu0 %v435
    %v437 = vpop.xlane.xlu0 %436
    %v438 = vsel %vm434, %v431, -inf
    %439 = vmax.xlane.f32.xlu0 %v438
    %v440 = vpop.xlane.xlu0 %439
    %v441 = vsub.f32 %v426, %v437
    %v442 = vsub.f32 %v431, %v440
    %v443 = vmul.f32 %v441, 1.442695
    %v444 = vpow.pop %v443
    %v445 = vmul.f32 %v442, 1.442695
    %v446 = vpow.pop %v445
    %v447 = vsel %vm434, %v444, 0.0
    %448 = vadd.xlane.f32.xlu0 %v447
    %v449 = vpop.xlane.xlu0 %448
    %v450 = vsel %vm434, %v446, 0.0
    %451 = vadd.xlane.f32.xlu0 %v450
    %v452 = vpop.xlane.xlu0 %451
    %v453 = vrcp.pop %v449
    %v454 = vrcp.pop %v452
    %v455 = vmul.f32 %v444, %v453
    %v456 = vmul.f32 %v446, %v454
    %v458 = vsel %vm434, %v455, 0
    %v461 = vsel %vm434, %v456, 0
    %463 = vmatprep.subr.mxu0 0.0
    %464 = vmatpush1.msra.mxu0 0.0
    %465 = vmatprep.subr.mxu0 0.0
    %466 = vmatpush1.msra.mxu0 0.0
    %467 = vmatprep.subr.mxu0 0.0
    %468 = vmatpush1.msra.mxu0 0.0
    %469 = vmatprep.subr.mxu0 0.0
    %470 = vmatpush1.msra.mxu0 0.0
    %471 = vmatprep.subr.mxu0 0.0
    %472 = vmatpush1.msra.mxu0 0.0
    %473 = vmatprep.subr.mxu0 0.0
    %474 = vmatpush1.msra.mxu0 0.0
    %475 = vmatprep.subr.mxu0 0.0
    %476 = vmatpush1.msra.mxu0 0.0
    %477 = vmatprep.subr.mxu0 0.0
    %478 = vmatpush1.msra.mxu0 0.0
    %479 = vmatprep.subr.mxu0 0.0
    %480 = vmatpush1.msra.mxu0 0.0
    %481 = vmatprep.subr.mxu0 0.0
    %482 = vmatpush1.msra.mxu0 0.0
    %483 = vmatprep.subr.mxu0 0.0
    %484 = vmatpush1.msra.mxu0 0.0
    %485 = vmatprep.subr.mxu0 0.0
    %486 = vmatpush1.msra.mxu0 0.0
    %487 = vmatprep.subr.mxu0 0.0
    %488 = vmatpush1.msra.mxu0 0.0
    %489 = vmatprep.subr.mxu0 0.0
    %490 = vmatpush1.msra.mxu0 0.0
    %491 = vmatprep.subr.mxu0 0.0
    %492 = vmatpush1.msra.mxu0 %v343
    %493 = vmatprep.subr.mxu0 0.0
    %494 = vmatpush1.msra.mxu0 %v338
    %495 = vmatprep.subr.mxu0 0.0
    %496 = vmatpush2.msra.mxu0 0.0
    %497 = vmatprep.subr.mxu0 0.0
    %498 = vmatpush2.msra.mxu0 0.0
    %499 = vmatprep.subr.mxu0 0.0
    %500 = vmatpush2.msra.mxu0 0.0
    %501 = vmatprep.subr.mxu0 0.0
    %502 = vmatpush2.msra.mxu0 0.0
    %503 = vmatprep.subr.mxu0 0.0
    %504 = vmatpush2.msra.mxu0 0.0
    %505 = vmatprep.subr.mxu0 0.0
    %506 = vmatpush2.msra.mxu0 0.0
    %507 = vmatprep.subr.mxu0 0.0
    %508 = vmatpush2.msra.mxu0 0.0
    %509 = vmatprep.subr.mxu0 0.0
    %510 = vmatpush2.msra.mxu0 0.0
    %511 = vmatprep.subr.mxu0 0.0
    %512 = vmatpush2.msra.mxu0 0.0
    %513 = vmatprep.subr.mxu0 0.0
    %514 = vmatpush2.msra.mxu0 0.0
    %515 = vmatprep.subr.mxu0 0.0
    %516 = vmatpush2.msra.mxu0 0.0
    %517 = vmatprep.subr.mxu0 0.0
    %518 = vmatpush2.msra.mxu0 0.0
    %519 = vmatprep.subr.mxu0 0.0
    %520 = vmatpush2.msra.mxu0 0.0
    %521 = vmatprep.subr.mxu0 0.0
    %522 = vmatpush2.msra.mxu0 0.0
    %523 = vmatprep.subr.mxu0 0.0
    %524 = vmatpush2.msra.mxu0 0.0
    %525 = vmatprep.subr.mxu0 0.0
    %526 = vmatpush2.msra.mxu0 0.0
    %527 = vmatprep.mubr.f32.mxu0 0.0
    %528 = vmatmul.mubr.f32.gmra.mxu0 %v458
    %v529 = vpop.f32.mrf.mxu0
    %v530 = vadd.f32 0.0, %v529
    %v531 = vpop.f32.mrf.mxu0
    %532 = vmatprep.mubr.f32.mxu0 0.0
    %533 = vmatmul.mubr.f32.gmra.mxu0 %v461
    %v534 = vpop.f32.mrf.mxu0
    %v535 = vadd.f32 0.0, %v534
    %v536 = vpop.f32.mrf.mxu0
    %537 = vdwg.mxu0
    %538 = vrot.lane.b32.xlu0 %v168, 120
    %v539 = vpop.permute.xlu0 %538
    %540 = vrot.lane.b32.xlu0 %v173, 120
    %v541 = vpop.permute.xlu0 %540
    %542 = vrot.lane.b32.xlu0 %v253, 120
    %v543 = vpop.permute.xlu0 %542
    %544 = vrot.lane.b32.xlu0 %v258, 120
    %v545 = vpop.permute.xlu0 %544
    %v546 = vsel %vm346, %v539, 0
    %v548 = vsel %vm346, %v541, 0
    %v550 = vsel %vm346, %v543, 0
    %v552 = vsel %vm346, %v545, 0
    %554 = vmatprep.subr.mxu0 0.0
    %555 = vmatpush1.xpose.msra.mxu0 0.0
    %556 = vmatprep.subr.mxu0 0.0
    %557 = vmatpush1.xpose.msra.mxu0 0.0
    %558 = vmatprep.subr.mxu0 0.0
    %559 = vmatpush1.xpose.msra.mxu0 0.0
    %560 = vmatprep.subr.mxu0 0.0
    %561 = vmatpush1.xpose.msra.mxu0 0.0
    %562 = vmatprep.subr.mxu0 0.0
    %563 = vmatpush1.xpose.msra.mxu0 0.0
    %564 = vmatprep.subr.mxu0 0.0
    %565 = vmatpush1.xpose.msra.mxu0 0.0
    %566 = vmatprep.subr.mxu0 0.0
    %567 = vmatpush1.xpose.msra.mxu0 0.0
    %568 = vmatprep.subr.mxu0 0.0
    %569 = vmatpush1.xpose.msra.mxu0 0.0
    %570 = vmatprep.subr.mxu0 0.0
    %571 = vmatpush1.xpose.msra.mxu0 0.0
    %572 = vmatprep.subr.mxu0 0.0
    %573 = vmatpush1.xpose.msra.mxu0 0.0
    %574 = vmatprep.subr.mxu0 0.0
    %575 = vmatpush1.xpose.msra.mxu0 0.0
    %576 = vmatprep.subr.mxu0 0.0
    %577 = vmatpush1.xpose.msra.mxu0 0.0
    %578 = vmatprep.subr.mxu0 0.0
    %579 = vmatpush1.xpose.msra.mxu0 0.0
    %580 = vmatprep.subr.mxu0 0.0
    %581 = vmatpush1.xpose.msra.mxu0 0.0
    %582 = vmatprep.subr.mxu0 0.0
    %583 = vmatpush1.xpose.msra.mxu0 %v552
    %584 = vmatprep.subr.mxu0 0.0
    %585 = vmatpush1.xpose.msra.mxu0 %v550
    %586 = vmatprep.subr.mxu0 0.0
    %587 = vmatpush2.xpose.msra.mxu0 0.0
    %588 = vmatprep.subr.mxu0 0.0
    %589 = vmatpush2.xpose.msra.mxu0 0.0
    %590 = vmatprep.subr.mxu0 0.0
    %591 = vmatpush2.xpose.msra.mxu0 0.0
    %592 = vmatprep.subr.mxu0 0.0
    %593 = vmatpush2.xpose.msra.mxu0 0.0
    %594 = vmatprep.subr.mxu0 0.0
    %595 = vmatpush2.xpose.msra.mxu0 0.0
    %596 = vmatprep.subr.mxu0 0.0
    %597 = vmatpush2.xpose.msra.mxu0 0.0
    %598 = vmatprep.subr.mxu0 0.0
    %599 = vmatpush2.xpose.msra.mxu0 0.0
    %600 = vmatprep.subr.mxu0 0.0
    %601 = vmatpush2.xpose.msra.mxu0 0.0
    %602 = vmatprep.subr.mxu0 0.0
    %603 = vmatpush2.xpose.msra.mxu0 0.0
    %604 = vmatprep.subr.mxu0 0.0
    %605 = vmatpush2.xpose.msra.mxu0 0.0
    %606 = vmatprep.subr.mxu0 0.0
    %607 = vmatpush2.xpose.msra.mxu0 0.0
    %608 = vmatprep.subr.mxu0 0.0
    %609 = vmatpush2.xpose.msra.mxu0 0.0
    %610 = vmatprep.subr.mxu0 0.0
    %611 = vmatpush2.xpose.msra.mxu0 0.0
    %612 = vmatprep.subr.mxu0 0.0
    %613 = vmatpush2.xpose.msra.mxu0 0.0
    %614 = vmatprep.subr.mxu0 0.0
    %615 = vmatpush2.xpose.msra.mxu0 0.0
    %616 = vmatprep.subr.mxu0 0.0
    %617 = vmatpush2.xpose.msra.mxu0 0.0
    %618 = vmatprep.mubr.f32.mxu0 0.0
    %619 = vmatmul.mubr.f32.gmra.mxu0 %v546
    %v620 = vpop.f32.mrf.mxu0
    %v621 = vadd.f32 %v27, %v620
    %v622 = vpop.f32.mrf.mxu0
    %623 = vmatprep.mubr.f32.mxu0 0.0
    %624 = vmatmul.mubr.f32.gmra.mxu0 %v548
    %v625 = vpop.f32.mrf.mxu0
    %v626 = vadd.f32 %v28, %v625
    %v627 = vpop.f32.mrf.mxu0
    %628 = vdwg.mxu0
    %v629 = vsel %vm434, %v621, -inf
    %630 = vmax.xlane.f32.xlu0 %v629
    %v631 = vpop.xlane.xlu0 %630
    %v632 = vsel %vm434, %v626, -inf
    %633 = vmax.xlane.f32.xlu0 %v632
    %v634 = vpop.xlane.xlu0 %633
    %v635 = vsub.f32 %v621, %v631
    %v636 = vsub.f32 %v626, %v634
    %v637 = vmul.f32 %v635, 1.442695
    %v638 = vpow.pop %v637
    %v639 = vmul.f32 %v636, 1.442695
    %v640 = vpow.pop %v639
    %v641 = vsel %vm434, %v638, 0.0
    %642 = vadd.xlane.f32.xlu0 %v641
    %v643 = vpop.xlane.xlu0 %642
    %v644 = vsel %vm434, %v640, 0.0
    %645 = vadd.xlane.f32.xlu0 %v644
    %v646 = vpop.xlane.xlu0 %645
    %v647 = vrcp.pop %v643
    %v648 = vrcp.pop %v646
    %v649 = vmul.f32 %v638, %v647
    %v650 = vmul.f32 %v640, %v648
    %653 = vrot.lane.b32.xlu0 %v338, 120
    %v654 = vpop.permute.xlu0 %653
    %655 = vrot.lane.b32.xlu0 %v343, 120
    %v656 = vpop.permute.xlu0 %655
    %v660 = vsel %vm434, %v649, 0
    %v663 = vsel %vm434, %v650, 0
    %665 = vmatprep.subr.mxu0 0.0
    %666 = vmatpush1.msra.mxu0 0.0
    %667 = vmatprep.subr.mxu0 0.0
    %668 = vmatpush1.msra.mxu0 0.0
    %669 = vmatprep.subr.mxu0 0.0
    %670 = vmatpush1.msra.mxu0 0.0
    %671 = vmatprep.subr.mxu0 0.0
    %672 = vmatpush1.msra.mxu0 0.0
    %673 = vmatprep.subr.mxu0 0.0
    %674 = vmatpush1.msra.mxu0 0.0
    %675 = vmatprep.subr.mxu0 0.0
    %676 = vmatpush1.msra.mxu0 0.0
    %677 = vmatprep.subr.mxu0 0.0
    %678 = vmatpush1.msra.mxu0 0.0
    %679 = vmatprep.subr.mxu0 0.0
    %680 = vmatpush1.msra.mxu0 0.0
    %681 = vmatprep.subr.mxu0 0.0
    %682 = vmatpush1.msra.mxu0 0.0
    %683 = vmatprep.subr.mxu0 0.0
    %684 = vmatpush1.msra.mxu0 0.0
    %685 = vmatprep.subr.mxu0 0.0
    %686 = vmatpush1.msra.mxu0 0.0
    %687 = vmatprep.subr.mxu0 0.0
    %688 = vmatpush1.msra.mxu0 0.0
    %689 = vmatprep.subr.mxu0 0.0
    %690 = vmatpush1.msra.mxu0 0.0
    %691 = vmatprep.subr.mxu0 0.0
    %692 = vmatpush1.msra.mxu0 0.0
    %693 = vmatprep.subr.mxu0 0.0
    %694 = vmatpush1.msra.mxu0 %v656
    %695 = vmatprep.subr.mxu0 0.0
    %696 = vmatpush1.msra.mxu0 %v654
    %697 = vmatprep.subr.mxu0 0.0
    %698 = vmatpush2.msra.mxu0 0.0
    %699 = vmatprep.subr.mxu0 0.0
    %700 = vmatpush2.msra.mxu0 0.0
    %701 = vmatprep.subr.mxu0 0.0
    %702 = vmatpush2.msra.mxu0 0.0
    %703 = vmatprep.subr.mxu0 0.0
    %704 = vmatpush2.msra.mxu0 0.0
    %705 = vmatprep.subr.mxu0 0.0
    %706 = vmatpush2.msra.mxu0 0.0
    %707 = vmatprep.subr.mxu0 0.0
    %708 = vmatpush2.msra.mxu0 0.0
    %709 = vmatprep.subr.mxu0 0.0
    %710 = vmatpush2.msra.mxu0 0.0
    %711 = vmatprep.subr.mxu0 0.0
    %712 = vmatpush2.msra.mxu0 0.0
    %713 = vmatprep.subr.mxu0 0.0
    %714 = vmatpush2.msra.mxu0 0.0
    %715 = vmatprep.subr.mxu0 0.0
    %716 = vmatpush2.msra.mxu0 0.0
    %717 = vmatprep.subr.mxu0 0.0
    %718 = vmatpush2.msra.mxu0 0.0
    %719 = vmatprep.subr.mxu0 0.0
    %720 = vmatpush2.msra.mxu0 0.0
    %721 = vmatprep.subr.mxu0 0.0
    %722 = vmatpush2.msra.mxu0 0.0
    %723 = vmatprep.subr.mxu0 0.0
    %724 = vmatpush2.msra.mxu0 0.0
    %725 = vmatprep.subr.mxu0 0.0
    %726 = vmatpush2.msra.mxu0 0.0
    %727 = vmatprep.subr.mxu0 0.0
    %728 = vmatpush2.msra.mxu0 0.0
    %729 = vmatprep.mubr.f32.mxu0 0.0
    %730 = vmatmul.mubr.f32.gmra.mxu0 %v660
    %v731 = vpop.f32.mrf.mxu0
    %v732 = vadd.f32 0.0, %v731
    %v733 = vpop.f32.mrf.mxu0
    %734 = vmatprep.mubr.f32.mxu0 0.0
    %735 = vmatmul.mubr.f32.gmra.mxu0 %v663
    %v736 = vpop.f32.mrf.mxu0
    %v737 = vadd.f32 0.0, %v736
    %v738 = vpop.f32.mrf.mxu0
    %739 = vdwg.mxu0
    %740 = vrot.lane.b32.xlu0 %v168, 112
    %v741 = vpop.permute.xlu0 %740
    %742 = vrot.lane.b32.xlu0 %v173, 112
    %v743 = vpop.permute.xlu0 %742
    %744 = vrot.lane.b32.xlu0 %v253, 112
    %v745 = vpop.permute.xlu0 %744
    %746 = vrot.lane.b32.xlu0 %v258, 112
    %v747 = vpop.permute.xlu0 %746
    %v748 = vsel %vm346, %v741, 0
    %v750 = vsel %vm346, %v743, 0
    %v752 = vsel %vm346, %v745, 0
    %v754 = vsel %vm346, %v747, 0
    %756 = vmatprep.subr.mxu0 0.0
    %757 = vmatpush1.xpose.msra.mxu0 0.0
    %758 = vmatprep.subr.mxu0 0.0
    %759 = vmatpush1.xpose.msra.mxu0 0.0
    %760 = vmatprep.subr.mxu0 0.0
    %761 = vmatpush1.xpose.msra.mxu0 0.0
    %762 = vmatprep.subr.mxu0 0.0
    %763 = vmatpush1.xpose.msra.mxu0 0.0
    %764 = vmatprep.subr.mxu0 0.0
    %765 = vmatpush1.xpose.msra.mxu0 0.0
    %766 = vmatprep.subr.mxu0 0.0
    %767 = vmatpush1.xpose.msra.mxu0 0.0
    %768 = vmatprep.subr.mxu0 0.0
    %769 = vmatpush1.xpose.msra.mxu0 0.0
    %770 = vmatprep.subr.mxu0 0.0
    %771 = vmatpush1.xpose.msra.mxu0 0.0
    %772 = vmatprep.subr.mxu0 0.0
    %773 = vmatpush1.xpose.msra.mxu0 0.0
    %774 = vmatprep.subr.mxu0 0.0
    %775 = vmatpush1.xpose.msra.mxu0 0.0
    %776 = vmatprep.subr.mxu0 0.0
    %777 = vmatpush1.xpose.msra.mxu0 0.0
    %778 = vmatprep.subr.mxu0 0.0
    %779 = vmatpush1.xpose.msra.mxu0 0.0
    %780 = vmatprep.subr.mxu0 0.0
    %781 = vmatpush1.xpose.msra.mxu0 0.0
    %782 = vmatprep.subr.mxu0 0.0
    %783 = vmatpush1.xpose.msra.mxu0 0.0
    %784 = vmatprep.subr.mxu0 0.0
    %785 = vmatpush1.xpose.msra.mxu0 %v754
    %786 = vmatprep.subr.mxu0 0.0
    %787 = vmatpush1.xpose.msra.mxu0 %v752
    %788 = vmatprep.subr.mxu0 0.0
    %789 = vmatpush2.xpose.msra.mxu0 0.0
    %790 = vmatprep.subr.mxu0 0.0
    %791 = vmatpush2.xpose.msra.mxu0 0.0
    %792 = vmatprep.subr.mxu0 0.0
    %793 = vmatpush2.xpose.msra.mxu0 0.0
    %794 = vmatprep.subr.mxu0 0.0
    %795 = vmatpush2.xpose.msra.mxu0 0.0
    %796 = vmatprep.subr.mxu0 0.0
    %797 = vmatpush2.xpose.msra.mxu0 0.0
    %798 = vmatprep.subr.mxu0 0.0
    %799 = vmatpush2.xpose.msra.mxu0 0.0
    %800 = vmatprep.subr.mxu0 0.0
    %801 = vmatpush2.xpose.msra.mxu0 0.0
    %802 = vmatprep.subr.mxu0 0.0
    %803 = vmatpush2.xpose.msra.mxu0 0.0
    %804 = vmatprep.subr.mxu0 0.0
    %805 = vmatpush2.xpose.msra.mxu0 0.0
    %806 = vmatprep.subr.mxu0 0.0
    %807 = vmatpush2.xpose.msra.mxu0 0.0
    %808 = vmatprep.subr.mxu0 0.0
    %809 = vmatpush2.xpose.msra.mxu0 0.0
    %810 = vmatprep.subr.mxu0 0.0
    %811 = vmatpush2.xpose.msra.mxu0 0.0
    %812 = vmatprep.subr.mxu0 0.0
    %813 = vmatpush2.xpose.msra.mxu0 0.0
    %814 = vmatprep.subr.mxu0 0.0
    %815 = vmatpush2.xpose.msra.mxu0 0.0
    %816 = vmatprep.subr.mxu0 0.0
    %817 = vmatpush2.xpose.msra.mxu0 0.0
    %818 = vmatprep.subr.mxu0 0.0
    %819 = vmatpush2.xpose.msra.mxu0 0.0
    %820 = vmatprep.mubr.f32.mxu0 0.0
    %821 = vmatmul.mubr.f32.gmra.mxu0 %v748
    %v822 = vpop.f32.mrf.mxu0
    %v823 = vadd.f32 %v27, %v822
    %v824 = vpop.f32.mrf.mxu0
    %825 = vmatprep.mubr.f32.mxu0 0.0
    %826 = vmatmul.mubr.f32.gmra.mxu0 %v750
    %v827 = vpop.f32.mrf.mxu0
    %v828 = vadd.f32 %v28, %v827
    %v829 = vpop.f32.mrf.mxu0
    %830 = vdwg.mxu0
    %v831 = vsel %vm434, %v823, -inf
    %832 = vmax.xlane.f32.xlu0 %v831
    %v833 = vpop.xlane.xlu0 %832
    %v834 = vsel %vm434, %v828, -inf
    %835 = vmax.xlane.f32.xlu0 %v834
    %v836 = vpop.xlane.xlu0 %835
    %v837 = vsub.f32 %v823, %v833
    %v838 = vsub.f32 %v828, %v836
    %v839 = vmul.f32 %v837, 1.442695
    %v840 = vpow.pop %v839
    %v841 = vmul.f32 %v838, 1.442695
    %v842 = vpow.pop %v841
    %v843 = vsel %vm434, %v840, 0.0
    %844 = vadd.xlane.f32.xlu0 %v843
    %v845 = vpop.xlane.xlu0 %844
    %v846 = vsel %vm434, %v842, 0.0
    %847 = vadd.xlane.f32.xlu0 %v846
    %v848 = vpop.xlane.xlu0 %847
    %v849 = vrcp.pop %v845
    %v850 = vrcp.pop %v848
    %v851 = vmul.f32 %v840, %v849
    %v852 = vmul.f32 %v842, %v850
    %853 = vrot.lane.b32.xlu0 %v338, 112
    %v854 = vpop.permute.xlu0 %853
    %855 = vrot.lane.b32.xlu0 %v343, 112
    %v856 = vpop.permute.xlu0 %855
    %v860 = vsel %vm434, %v851, 0
    %v863 = vsel %vm434, %v852, 0
    %865 = vmatprep.subr.mxu0 0.0
    %866 = vmatpush1.msra.mxu0 0.0
    %867 = vmatprep.subr.mxu0 0.0
    %868 = vmatpush1.msra.mxu0 0.0
    %869 = vmatprep.subr.mxu0 0.0
    %870 = vmatpush1.msra.mxu0 0.0
    %871 = vmatprep.subr.mxu0 0.0
    %872 = vmatpush1.msra.mxu0 0.0
    %873 = vmatprep.subr.mxu0 0.0
    %874 = vmatpush1.msra.mxu0 0.0
    %875 = vmatprep.subr.mxu0 0.0
    %876 = vmatpush1.msra.mxu0 0.0
    %877 = vmatprep.subr.mxu0 0.0
    %878 = vmatpush1.msra.mxu0 0.0
    %879 = vmatprep.subr.mxu0 0.0
    %880 = vmatpush1.msra.mxu0 0.0
    %881 = vmatprep.subr.mxu0 0.0
    %882 = vmatpush1.msra.mxu0 0.0
    %883 = vmatprep.subr.mxu0 0.0
    %884 = vmatpush1.msra.mxu0 0.0
    %885 = vmatprep.subr.mxu0 0.0
    %886 = vmatpush1.msra.mxu0 0.0
    %887 = vmatprep.subr.mxu0 0.0
    %888 = vmatpush1.msra.mxu0 0.0
    %889 = vmatprep.subr.mxu0 0.0
    %890 = vmatpush1.msra.mxu0 0.0
    %891 = vmatprep.subr.mxu0 0.0
    %892 = vmatpush1.msra.mxu0 0.0
    %893 = vmatprep.subr.mxu0 0.0
    %894 = vmatpush1.msra.mxu0 %v856
    %895 = vmatprep.subr.mxu0 0.0
    %896 = vmatpush1.msra.mxu0 %v854
    %897 = vmatprep.subr.mxu0 0.0
    %898 = vmatpush2.msra.mxu0 0.0
    %899 = vmatprep.subr.mxu0 0.0
    %900 = vmatpush2.msra.mxu0 0.0
    %901 = vmatprep.subr.mxu0 0.0
    %902 = vmatpush2.msra.mxu0 0.0
    %903 = vmatprep.subr.mxu0 0.0
    %904 = vmatpush2.msra.mxu0 0.0
    %905 = vmatprep.subr.mxu0 0.0
    %906 = vmatpush2.msra.mxu0 0.0
    %907 = vmatprep.subr.mxu0 0.0
    %908 = vmatpush2.msra.mxu0 0.0
    %909 = vmatprep.subr.mxu0 0.0
    %910 = vmatpush2.msra.mxu0 0.0
    %911 = vmatprep.subr.mxu0 0.0
    %912 = vmatpush2.msra.mxu0 0.0
    %913 = vmatprep.subr.mxu0 0.0
    %914 = vmatpush2.msra.mxu0 0.0
    %915 = vmatprep.subr.mxu0 0.0
    %916 = vmatpush2.msra.mxu0 0.0
    %917 = vmatprep.subr.mxu0 0.0
    %918 = vmatpush2.msra.mxu0 0.0
    %919 = vmatprep.subr.mxu0 0.0
    %920 = vmatpush2.msra.mxu0 0.0
    %921 = vmatprep.subr.mxu0 0.0
    %922 = vmatpush2.msra.mxu0 0.0
    %923 = vmatprep.subr.mxu0 0.0
    %924 = vmatpush2.msra.mxu0 0.0
    %925 = vmatprep.subr.mxu0 0.0
    %926 = vmatpush2.msra.mxu0 0.0
    %927 = vmatprep.subr.mxu0 0.0
    %928 = vmatpush2.msra.mxu0 0.0
    %929 = vmatprep.mubr.f32.mxu0 0.0
    %930 = vmatmul.mubr.f32.gmra.mxu0 %v860
    %v931 = vpop.f32.mrf.mxu0
    %v932 = vadd.f32 0.0, %v931
    %v933 = vpop.f32.mrf.mxu0
    %934 = vmatprep.mubr.f32.mxu0 0.0
    %935 = vmatmul.mubr.f32.gmra.mxu0 %v863
    %v936 = vpop.f32.mrf.mxu0
    %v937 = vadd.f32 0.0, %v936
    %v938 = vpop.f32.mrf.mxu0
    %939 = vdwg.mxu0
    %940 = vrot.lane.b32.xlu0 %v168, 104
    %v941 = vpop.permute.xlu0 %940
    %942 = vrot.lane.b32.xlu0 %v173, 104
    %v943 = vpop.permute.xlu0 %942
    %944 = vrot.lane.b32.xlu0 %v253, 104
    %v945 = vpop.permute.xlu0 %944
    %946 = vrot.lane.b32.xlu0 %v258, 104
    %v947 = vpop.permute.xlu0 %946
    %v948 = vsel %vm346, %v941, 0
    %v950 = vsel %vm346, %v943, 0
    %v952 = vsel %vm346, %v945, 0
    %v954 = vsel %vm346, %v947, 0
    %956 = vmatprep.subr.mxu0 0.0
    %957 = vmatpush1.xpose.msra.mxu0 0.0
    %958 = vmatprep.subr.mxu0 0.0
    %959 = vmatpush1.xpose.msra.mxu0 0.0
    %960 = vmatprep.subr.mxu0 0.0
    %961 = vmatpush1.xpose.msra.mxu0 0.0
    %962 = vmatprep.subr.mxu0 0.0
    %963 = vmatpush1.xpose.msra.mxu0 0.0
    %964 = vmatprep.subr.mxu0 0.0
    %965 = vmatpush1.xpose.msra.mxu0 0.0
    %966 = vmatprep.subr.mxu0 0.0
    %967 = vmatpush1.xpose.msra.mxu0 0.0
    %968 = vmatprep.subr.mxu0 0.0
    %969 = vmatpush1.xpose.msra.mxu0 0.0
    %970 = vmatprep.subr.mxu0 0.0
    %971 = vmatpush1.xpose.msra.mxu0 0.0
    %972 = vmatprep.subr.mxu0 0.0
    %973 = vmatpush1.xpose.msra.mxu0 0.0
    %974 = vmatprep.subr.mxu0 0.0
    %975 = vmatpush1.xpose.msra.mxu0 0.0
    %976 = vmatprep.subr.mxu0 0.0
    %977 = vmatpush1.xpose.msra.mxu0 0.0
    %978 = vmatprep.subr.mxu0 0.0
    %979 = vmatpush1.xpose.msra.mxu0 0.0
    %980 = vmatprep.subr.mxu0 0.0
    %981 = vmatpush1.xpose.msra.mxu0 0.0
    %982 = vmatprep.subr.mxu0 0.0
    %983 = vmatpush1.xpose.msra.mxu0 0.0
    %984 = vmatprep.subr.mxu0 0.0
    %985 = vmatpush1.xpose.msra.mxu0 %v954
    %986 = vmatprep.subr.mxu0 0.0
    %987 = vmatpush1.xpose.msra.mxu0 %v952
    %988 = vmatprep.subr.mxu0 0.0
    %989 = vmatpush2.xpose.msra.mxu0 0.0
    %990 = vmatprep.subr.mxu0 0.0
    %991 = vmatpush2.xpose.msra.mxu0 0.0
    %992 = vmatprep.subr.mxu0 0.0
    %993 = vmatpush2.xpose.msra.mxu0 0.0
    %994 = vmatprep.subr.mxu0 0.0
    %995 = vmatpush2.xpose.msra.mxu0 0.0
    %996 = vmatprep.subr.mxu0 0.0
    %997 = vmatpush2.xpose.msra.mxu0 0.0
    %998 = vmatprep.subr.mxu0 0.0
    %999 = vmatpush2.xpose.msra.mxu0 0.0
    %1000 = vmatprep.subr.mxu0 0.0
    %1001 = vmatpush2.xpose.msra.mxu0 0.0
    %1002 = vmatprep.subr.mxu0 0.0
    %1003 = vmatpush2.xpose.msra.mxu0 0.0
    %1004 = vmatprep.subr.mxu0 0.0
    %1005 = vmatpush2.xpose.msra.mxu0 0.0
    %1006 = vmatprep.subr.mxu0 0.0
    %1007 = vmatpush2.xpose.msra.mxu0 0.0
    %1008 = vmatprep.subr.mxu0 0.0
    %1009 = vmatpush2.xpose.msra.mxu0 0.0
    %1010 = vmatprep.subr.mxu0 0.0
    %1011 = vmatpush2.xpose.msra.mxu0 0.0
    %1012 = vmatprep.subr.mxu0 0.0
    %1013 = vmatpush2.xpose.msra.mxu0 0.0
    %1014 = vmatprep.subr.mxu0 0.0
    %1015 = vmatpush2.xpose.msra.mxu0 0.0
    %1016 = vmatprep.subr.mxu0 0.0
    %1017 = vmatpush2.xpose.msra.mxu0 0.0
    %1018 = vmatprep.subr.mxu0 0.0
    %1019 = vmatpush2.xpose.msra.mxu0 0.0
    %1020 = vmatprep.mubr.f32.mxu0 0.0
    %1021 = vmatmul.mubr.f32.gmra.mxu0 %v948
    %v1022 = vpop.f32.mrf.mxu0
    %v1023 = vadd.f32 %v27, %v1022
    %v1024 = vpop.f32.mrf.mxu0
    %1025 = vmatprep.mubr.f32.mxu0 0.0
    %1026 = vmatmul.mubr.f32.gmra.mxu0 %v950
    %v1027 = vpop.f32.mrf.mxu0
    %v1028 = vadd.f32 %v28, %v1027
    %v1029 = vpop.f32.mrf.mxu0
    %1030 = vdwg.mxu0
    %v1031 = vsel %vm434, %v1023, -inf
    %1032 = vmax.xlane.f32.xlu0 %v1031
    %v1033 = vpop.xlane.xlu0 %1032
    %v1034 = vsel %vm434, %v1028, -inf
    %1035 = vmax.xlane.f32.xlu0 %v1034
    %v1036 = vpop.xlane.xlu0 %1035
    %v1037 = vsub.f32 %v1023, %v1033
    %v1038 = vsub.f32 %v1028, %v1036
    %v1039 = vmul.f32 %v1037, 1.442695
    %v1040 = vpow.pop %v1039
    %v1041 = vmul.f32 %v1038, 1.442695
    %v1042 = vpow.pop %v1041
    %v1043 = vsel %vm434, %v1040, 0.0
    %1044 = vadd.xlane.f32.xlu0 %v1043
    %v1045 = vpop.xlane.xlu0 %1044
    %v1046 = vsel %vm434, %v1042, 0.0
    %1047 = vadd.xlane.f32.xlu0 %v1046
    %v1048 = vpop.xlane.xlu0 %1047
    %v1049 = vrcp.pop %v1045
    %v1050 = vrcp.pop %v1048
    %v1051 = vmul.f32 %v1040, %v1049
    %v1052 = vmul.f32 %v1042, %v1050
    %1053 = vrot.lane.b32.xlu0 %v338, 104
    %v1054 = vpop.permute.xlu0 %1053
    %1055 = vrot.lane.b32.xlu0 %v343, 104
    %v1056 = vpop.permute.xlu0 %1055
    %v1060 = vsel %vm434, %v1051, 0
    %v1063 = vsel %vm434, %v1052, 0
    %1065 = vmatprep.subr.mxu0 0.0
    %1066 = vmatpush1.msra.mxu0 0.0
    %1067 = vmatprep.subr.mxu0 0.0
    %1068 = vmatpush1.msra.mxu0 0.0
    %1069 = vmatprep.subr.mxu0 0.0
    %1070 = vmatpush1.msra.mxu0 0.0
    %1071 = vmatprep.subr.mxu0 0.0
    %1072 = vmatpush1.msra.mxu0 0.0
    %1073 = vmatprep.subr.mxu0 0.0
    %1074 = vmatpush1.msra.mxu0 0.0
    %1075 = vmatprep.subr.mxu0 0.0
    %1076 = vmatpush1.msra.mxu0 0.0
    %1077 = vmatprep.subr.mxu0 0.0
    %1078 = vmatpush1.msra.mxu0 0.0
    %1079 = vmatprep.subr.mxu0 0.0
    %1080 = vmatpush1.msra.mxu0 0.0
    %1081 = vmatprep.subr.mxu0 0.0
    %1082 = vmatpush1.msra.mxu0 0.0
    %1083 = vmatprep.subr.mxu0 0.0
    %1084 = vmatpush1.msra.mxu0 0.0
    %1085 = vmatprep.subr.mxu0 0.0
    %1086 = vmatpush1.msra.mxu0 0.0
    %1087 = vmatprep.subr.mxu0 0.0
    %1088 = vmatpush1.msra.mxu0 0.0
    %1089 = vmatprep.subr.mxu0 0.0
    %1090 = vmatpush1.msra.mxu0 0.0
    %1091 = vmatprep.subr.mxu0 0.0
    %1092 = vmatpush1.msra.mxu0 0.0
    %1093 = vmatprep.subr.mxu0 0.0
    %1094 = vmatpush1.msra.mxu0 %v1056
    %1095 = vmatprep.subr.mxu0 0.0
    %1096 = vmatpush1.msra.mxu0 %v1054
    %1097 = vmatprep.subr.mxu0 0.0
    %1098 = vmatpush2.msra.mxu0 0.0
    %1099 = vmatprep.subr.mxu0 0.0
    %1100 = vmatpush2.msra.mxu0 0.0
    %1101 = vmatprep.subr.mxu0 0.0
    %1102 = vmatpush2.msra.mxu0 0.0
    %1103 = vmatprep.subr.mxu0 0.0
    %1104 = vmatpush2.msra.mxu0 0.0
    %1105 = vmatprep.subr.mxu0 0.0
    %1106 = vmatpush2.msra.mxu0 0.0
    %1107 = vmatprep.subr.mxu0 0.0
    %1108 = vmatpush2.msra.mxu0 0.0
    %1109 = vmatprep.subr.mxu0 0.0
    %1110 = vmatpush2.msra.mxu0 0.0
    %1111 = vmatprep.subr.mxu0 0.0
    %1112 = vmatpush2.msra.mxu0 0.0
    %1113 = vmatprep.subr.mxu0 0.0
    %1114 = vmatpush2.msra.mxu0 0.0
    %1115 = vmatprep.subr.mxu0 0.0
    %1116 = vmatpush2.msra.mxu0 0.0
    %1117 = vmatprep.subr.mxu0 0.0
    %1118 = vmatpush2.msra.mxu0 0.0
    %1119 = vmatprep.subr.mxu0 0.0
    %1120 = vmatpush2.msra.mxu0 0.0
    %1121 = vmatprep.subr.mxu0 0.0
    %1122 = vmatpush2.msra.mxu0 0.0
    %1123 = vmatprep.subr.mxu0 0.0
    %1124 = vmatpush2.msra.mxu0 0.0
    %1125 = vmatprep.subr.mxu0 0.0
    %1126 = vmatpush2.msra.mxu0 0.0
    %1127 = vmatprep.subr.mxu0 0.0
    %1128 = vmatpush2.msra.mxu0 0.0
    %1129 = vmatprep.mubr.f32.mxu0 0.0
    %1130 = vmatmul.mubr.f32.gmra.mxu0 %v1060
    %v1131 = vpop.f32.mrf.mxu0
    %v1132 = vadd.f32 0.0, %v1131
    %v1133 = vpop.f32.mrf.mxu0
    %1134 = vmatprep.mubr.f32.mxu0 0.0
    %1135 = vmatmul.mubr.f32.gmra.mxu0 %v1063
    %v1136 = vpop.f32.mrf.mxu0
    %v1137 = vadd.f32 0.0, %v1136
    %v1138 = vpop.f32.mrf.mxu0
    %1139 = vdwg.mxu0
    %1142 = vrot.lane.b32.xlu0 %v732, 8
    %v1143 = vpop.permute.xlu0 %1142
    %1144 = vrot.lane.b32.xlu0 %v737, 8
    %v1145 = vpop.permute.xlu0 %1144
    %1150 = vrot.lane.b32.xlu0 %v932, 16
    %v1151 = vpop.permute.xlu0 %1150
    %1152 = vrot.lane.b32.xlu0 %v937, 16
    %v1153 = vpop.permute.xlu0 %1152
    %1158 = vrot.lane.b32.xlu0 %v1132, 24
    %v1159 = vpop.permute.xlu0 %1158
    %1160 = vrot.lane.b32.xlu0 %v1137, 24
    %v1161 = vpop.permute.xlu0 %1160
    %v1164 = vsel %vm346, %v530, %v1143
    %v1165 = vsel %vm346, %v535, %v1145
    %v1166 = vsel %vm434, %v1164, %v1151
    %v1167 = vsel %vm434, %v1165, %v1153
    %vm1168 = vcmask 195584
    %v1169 = vsel %vm1168, %v1166, %v1159
    %v1170 = vsel %vm1168, %v1167, %v1161
    %v1171 = vlaneseq
    %v1172 = vshrl.u32 %v1171, 7
    %v1173 = vsub.s32 0, %v1172
    %v1174 = vrot.slane %v34, %v1173
    %v1176 = vsel %vm51, %v1169, 0
    %v1179 = vsel %vm51, %v1170, 0
    %1181 = vmatprep.subr.mxu0 0.0
    %1182 = vmatpush1.msra.mxu0 0.0
    %1183 = vmatprep.subr.mxu0 0.0
    %1184 = vmatpush1.msra.mxu0 0.0
    %1185 = vmatprep.subr.mxu0 0.0
    %1186 = vmatpush1.msra.mxu0 0.0
    %1187 = vmatprep.subr.mxu0 0.0
    %1188 = vmatpush1.msra.mxu0 0.0
    %1189 = vmatprep.subr.mxu0 0.0
    %1190 = vmatpush1.msra.mxu0 0.0
    %1191 = vmatprep.subr.mxu0 0.0
    %1192 = vmatpush1.msra.mxu0 0.0
    %1193 = vmatprep.subr.mxu0 0.0
    %1194 = vmatpush1.msra.mxu0 0.0
    %1195 = vmatprep.subr.mxu0 0.0
    %1196 = vmatpush1.msra.mxu0 0.0
    %1197 = vmatprep.subr.mxu0 0.0
    %1198 = vmatpush1.msra.mxu0 0.0
    %1199 = vmatprep.subr.mxu0 0.0
    %1200 = vmatpush1.msra.mxu0 0.0
    %1201 = vmatprep.subr.mxu0 0.0
    %1202 = vmatpush1.msra.mxu0 0.0
    %1203 = vmatprep.subr.mxu0 0.0
    %1204 = vmatpush1.msra.mxu0 0.0
    %1205 = vmatprep.subr.mxu0 0.0
    %1206 = vmatpush1.msra.mxu0 %v50
    %1207 = vmatprep.subr.mxu0 0.0
    %1208 = vmatpush1.msra.mxu0 %v49
    %1209 = vmatprep.subr.mxu0 0.0
    %1210 = vmatpush1.msra.mxu0 %v48
    %1211 = vmatprep.subr.mxu0 0.0
    %1212 = vmatpush1.msra.mxu0 %v47
    %1213 = vmatprep.subr.mxu0 0.0
    %1214 = vmatpush2.msra.mxu0 0.0
    %1215 = vmatprep.subr.mxu0 0.0
    %1216 = vmatpush2.msra.mxu0 0.0
    %1217 = vmatprep.subr.mxu0 0.0
    %1218 = vmatpush2.msra.mxu0 0.0
    %1219 = vmatprep.subr.mxu0 0.0
    %1220 = vmatpush2.msra.mxu0 0.0
    %1221 = vmatprep.subr.mxu0 0.0
    %1222 = vmatpush2.msra.mxu0 0.0
    %1223 = vmatprep.subr.mxu0 0.0
    %1224 = vmatpush2.msra.mxu0 0.0
    %1225 = vmatprep.subr.mxu0 0.0
    %1226 = vmatpush2.msra.mxu0 0.0
    %1227 = vmatprep.subr.mxu0 0.0
    %1228 = vmatpush2.msra.mxu0 0.0
    %1229 = vmatprep.subr.mxu0 0.0
    %1230 = vmatpush2.msra.mxu0 0.0
    %1231 = vmatprep.subr.mxu0 0.0
    %1232 = vmatpush2.msra.mxu0 0.0
    %1233 = vmatprep.subr.mxu0 0.0
    %1234 = vmatpush2.msra.mxu0 0.0
    %1235 = vmatprep.subr.mxu0 0.0
    %1236 = vmatpush2.msra.mxu0 0.0
    %1237 = vmatprep.subr.mxu0 0.0
    %1238 = vmatpush2.msra.mxu0 0.0
    %1239 = vmatprep.subr.mxu0 0.0
    %1240 = vmatpush2.msra.mxu0 0.0
    %1241 = vmatprep.subr.mxu0 0.0
    %1242 = vmatpush2.msra.mxu0 0.0
    %1243 = vmatprep.subr.mxu0 0.0
    %1244 = vmatpush2.msra.mxu0 0.0
    %1245 = vmatprep.mubr.f32.mxu0 0.0
    %1246 = vmatmul.mubr.f32.gmra.mxu0 %v1176
    %v1247 = vpop.f32.mrf.mxu0
    %v1248 = vadd.f32 %v1174, %v1247
    %v1249 = vpop.f32.mrf.mxu0
    %1250 = vmatprep.mubr.f32.mxu0 0.0
    %1251 = vmatmul.mubr.f32.gmra.mxu0 %v1179
    %v1252 = vpop.f32.mrf.mxu0
    %v1253 = vadd.f32 %v1174, %v1252
    %v1254 = vpop.f32.mrf.mxu0
    %1255 = vdwg.mxu0
    %1256 = vst.msk [vmem:[#allocation2] sm:$0xff] %vm51, %v1248
    %1257 = vst.msk [vmem:[#allocation2 + $0x8] sm:$0xff] %vm51, %v1253
    // Predicated region
    $region22: #{tpu_custom_call.1} parent=1 // pred_check
      _
    $region23: #{tpu_custom_call.1} parent=1 // pred_check_branch
      %1259 = sbr.rel (0) target = $region25
    $region24: #{tpu_custom_call.1} parent=1 // pred_region
      %s1261 = ssub.s32 256, 256
      %1262 = vsyncadd [#allocation3], %s1261
      %s1263 = sshll.u32 [#allocation2], 4
      %s1264 = int_to_ptr.vmem [resolvable:$true] %s1263
      %1269 = dma.vmem_to_hbm [thread:$0]  %s1264, 256, %s5, [#allocation3], 128, 128, 8
    $region25: #{tpu_custom_call.1} parent=1 // pred_fallthru
      _
    // Predicated region
    $region26: #{tpu_custom_call.1} parent=1 // pred_check
      _
    $region27: #{tpu_custom_call.1} parent=1 // pred_check_branch
      %1271 = sbr.rel (0) target = $region29
    $region28: #{tpu_custom_call.1} parent=1 // pred_region
      %1272 = dma.done [#allocation3], 256
    $region29: #{tpu_custom_call.1} parent=1 // pred_fallthru
      _
    %1273 = vsyncpa [#allocation3], 1

</llo_original>
